<compile_context>
chip_gen: v7x
topology: tpu7x:2x2x1
jax: 0.10.0
libtpu: 0.0.40
codegen_flags: <defaults>
</compile_context>

<pallas_src>
import functools
import re

import jax
import jax.numpy as jnp
from jax.experimental import pallas as pl
from jax.experimental.pallas import tpu as pltpu

LANE = 128
_SMOOTH = 1e-05


def _cdiv(a, b):
    return -(-a // b)


def _round_down(x, m):
    return (x // m) * m


def _tpu_generation():
    """Best-effort TPU generation from device_kind (e.g. 'TPU v6 lite' -> 6)."""
    try:
        kind = jax.devices()[0].device_kind
    except Exception:
        return 6
    m = re.search(r"(\d+)", kind)
    return int(m.group(1)) if m else 6


def _min_rows(dtype):
    # Minimum second-to-last tile size for the dtype: f32->8, bf16->16, int8->32.
    return max(8, 32 // jnp.dtype(dtype).itemsize)


def _dice_bce_kernel(p_ref, t_ref, acc_ref, *, steps_per_core, tm, chunk,
                     m_valid, need_mask):
    """Accumulate per-core vector partial sums.

    acc_ref block: (1, 3, 8, 128) f32, resident across the inner grid axis.
      acc[0, 0] : sum of NEGATED per-element BCE terms (negated in epilogue)
      acc[0, 1] : sum of p * t   (intersection)
      acc[0, 2] : sum of p + t   (dice denominator)
    """
    c = pl.program_id(0)
    i = pl.program_id(1)

    @pl.when(i == 0)
    def _():
        acc_ref[...] = jnp.zeros_like(acc_ref)

    # Logical (unclamped) first row of this block; used for tail masking.
    block_row0 = (c * steps_per_core + i) * tm
    nchunks = tm // chunk
    unroll = 2 if (nchunks >= 2 and nchunks % 2 == 0) else 1

    def accumulate(masked):
        if masked:
            row_iota = jax.lax.broadcasted_iota(jnp.int32, (chunk, LANE), 0)

        def chunk_body(j, carry):
            nbce_a, pt_a, ps_a = carry
            r0 = pl.multiple_of(j * chunk, 8)
            p = p_ref[pl.ds(r0, chunk), :].astype(jnp.float32)
            t = t_ref[pl.ds(r0, chunk), :].astype(jnp.float32)
            if masked:
                # Zeroed (p, t) contributes exactly 0 to all three sums
                # (logs are clamped before the multiply, so no NaNs).
                valid = row_iota < (m_valid - block_row0 - j * chunk)
                p = jnp.where(valid, p, 0.0)
                t = jnp.where(valid, t, 0.0)
            # nn.BCELoss clamps each log term at -100 (PyTorch semantics).
            log_p = jnp.maximum(jnp.log(p), -100.0)
            log_1mp = jnp.maximum(jnp.log(1.0 - p), -100.0)
            # Negated BCE: (1-t)*log(1-p) + t*log(p); negate once in epilogue.
            nbce = log_1mp + t * (log_p - log_1mp)
            # (chunk,128) -> (8,128) with cross-vreg VPU adds only.
            nbce_a = nbce_a + nbce.reshape(-1, 8, LANE).sum(axis=0)
            pt_a = pt_a + (p * t).reshape(-1, 8, LANE).sum(axis=0)
            ps_a = ps_a + (p + t).reshape(-1, 8, LANE).sum(axis=0)
            return nbce_a, pt_a, ps_a

        zero = jnp.zeros((8, LANE), jnp.float32)
        nbce_a, pt_a, ps_a = jax.lax.fori_loop(
            0, nchunks, chunk_body, (zero, zero, zero), unroll=unroll)
        acc_ref[0, 0] += nbce_a
        acc_ref[0, 1] += pt_a
        acc_ref[0, 2] += ps_a

    if need_mask:
        # Only blocks that extend past the true row extent pay the mask cost.
        is_full = block_row0 + tm <= m_valid
        pl.when(is_full)(lambda: accumulate(False))
        pl.when(jnp.logical_not(is_full))(lambda: accumulate(True))
    else:
        accumulate(False)


def dice_bce_loss(inputs, targets):
    """DiceBCELoss forward. inputs/targets: same shape, inputs in [0, 1]."""
    n_true = int(inputs.size)
    assert int(targets.size) == n_true and n_true > 0

    p_flat = inputs.reshape(-1)
    t_flat = targets.reshape(-1)

    # Lane alignment: pad only up to the next 128 boundary (and up to the
    # minimum sublane-tile row count for narrow dtypes). Zero (p, t) elements
    # contribute exactly 0 to every partial sum; the mean uses n_true.
    g = max(_min_rows(inputs.dtype), _min_rows(targets.dtype))
    m_raw = _cdiv(n_true, LANE)
    if m_raw < g:
        m_raw = g
    pad = m_raw * LANE - n_true
    if pad:
        p_flat = jnp.pad(p_flat, (0, pad))
        t_flat = jnp.pad(t_flat, (0, pad))
    p2d = p_flat.reshape(m_raw, LANE)   # native dtype; f32 cast is in-kernel
    t2d = t_flat.reshape(m_raw, LANE)

    gen = _tpu_generation()
    ncores = 2 if gen >= 7 else 1       # v7x: 2 TensorCores per chip
    tm_cap = 8192 if gen >= 7 else (4096 if gen >= 6 else 2048)
    if ncores > 1 and m_raw < 2 * 64:
        ncores = 1                      # too small to split usefully

    per_core = _cdiv(m_raw, ncores)
    tm = min(tm_cap, max(g, _round_down(per_core, g)))
    if tm >= 64:
        tm = _round_down(tm, 64)        # so the 64-row chunk loop divides tm
    chunk = 64 if tm >= 64 else tm
    steps_per_core = _cdiv(m_raw, ncores * tm)
    nblocks_real = _cdiv(m_raw, tm)
    need_mask = ncores * steps_per_core * tm > m_raw
    last_block = nblocks_real - 1

    # Clamp the block index so no DMA is issued past the array; any fully
    # overhanging logical block re-reads the last real block and is masked
    # to zero inside the kernel (block_row0 uses the unclamped index).
    def in_map(c, i):
        return (jnp.minimum(c * steps_per_core + i, last_block), 0)

    block_bytes = tm * LANE * (p2d.dtype.itemsize + t2d.dtype.itemsize)
    vmem_limit = int(min(96 << 20, max(32 << 20, 4 * block_bytes + (8 << 20))))

    kernel = functools.partial(
        _dice_bce_kernel, steps_per_core=steps_per_core, tm=tm, chunk=chunk,
        m_valid=m_raw, need_mask=need_mask)

    lead_sem = pltpu.CORE_PARALLEL if ncores > 1 else pltpu.ARBITRARY

    partials = pl.pallas_call(
        kernel,
        out_shape=jax.ShapeDtypeStruct((ncores, 3, 8, LANE), jnp.float32),
        grid_spec=pltpu.PrefetchScalarGridSpec(
            num_scalar_prefetch=0,
            grid=(ncores, steps_per_core),
            in_specs=[
                pl.BlockSpec((tm, LANE), in_map),
                pl.BlockSpec((tm, LANE), in_map),
            ],
            out_specs=pl.BlockSpec((1, 3, 8, LANE), lambda c, i: (c, 0, 0, 0)),
        ),
        compiler_params=pltpu.CompilerParams(
            dimension_semantics=(lead_sem, pltpu.ARBITRARY),
            vmem_limit_bytes=vmem_limit),
    )(p2d, t2d)

    # Tiny epilogue in plain JAX: fold per-core (8,128) partials + scalar math.
    sums = partials.sum(axis=(0, 2, 3))   # [-bce_sum, intersection, p_sum+t_sum]
    bce_loss = -sums[0] / jnp.float32(n_true)
    dice_score = (2.0 * sums[1] + _SMOOTH) / (sums[2] + _SMOOTH)
    return bce_loss + (1.0 - dice_score)


if __name__ == "__main__":
    key = jax.random.PRNGKey(0)

    def reference(p, t):
        p = p.reshape(-1).astype(jnp.float32)
        t = t.reshape(-1).astype(jnp.float32)
        bce = jnp.mean(-(t * jnp.maximum(jnp.log(p), -100.0)
                         + (1.0 - t) * jnp.maximum(jnp.log(1.0 - p), -100.0)))
        dice = 1.0 - (2.0 * jnp.sum(p * t) + _SMOOTH) / (jnp.sum(p) + jnp.sum(t) + _SMOOTH)
        return bce + dice

    k1, k2, k3, k4, k5, k6 = jax.random.split(key, 6)

    # Case 1: lane-aligned NCHW shape (2*4*16*16 = 2048 elements), f32.
    shape1 = (2, 4, 16, 16)
    inputs1 = jax.nn.sigmoid(jax.random.normal(k1, shape1, dtype=jnp.float32))
    targets1 = (jax.random.uniform(k2, shape1) > 0.5).astype(jnp.float32)
    loss1 = dice_bce_loss(inputs1, targets1)
    jax.block_until_ready(loss1)
    ref1 = reference(inputs1, targets1)
    assert jnp.allclose(loss1, ref1, rtol=1e-5, atol=1e-5), (loss1, ref1)

    # Case 2: ragged element count (2*3*17*19 = 1938) exercising the small
    # lane-boundary pad path.
    shape2 = (2, 3, 17, 19)
    inputs2 = jax.nn.sigmoid(jax.random.normal(k3, shape2, dtype=jnp.float32))
    targets2 = (jax.random.uniform(k4, shape2) > 0.5).astype(jnp.float32)
    loss2 = dice_bce_loss(inputs2, targets2)
    jax.block_until_ready(loss2)
    ref2 = reference(inputs2, targets2)
    assert jnp.allclose(loss2, ref2, rtol=1e-5, atol=1e-5), (loss2, ref2)

    # Case 3: larger lane-aligned shape with narrow dtypes (bf16 activations,
    # int8 targets) and a partial last block (exercises the in-kernel mask
    # and the multi-chunk strip-mined loop).
    shape3 = (3, 5, 40, 64)   # 38400 elements -> 300 rows of 128 lanes
    inputs3 = jax.random.uniform(k5, shape3, minval=0.02, maxval=0.98,
                                 dtype=jnp.float32).astype(jnp.bfloat16)
    targets3 = (jax.random.uniform(k6, shape3) > 0.5).astype(jnp.int8)
    loss3 = dice_bce_loss(inputs3, targets3)
    jax.block_until_ready(loss3)
    ref3 = reference(inputs3, targets3)
    assert jnp.allclose(loss3, ref3, rtol=1e-4, atol=1e-4), (loss3, ref3)

    print("KERNEL_OK")
</pallas_src>

<mosaic_0001>
module attributes {stable_mosaic.version = 11 : i64} {
  func.func @_dice_bce_kernel(%arg0: i32, %arg1: i32, %arg2: memref<16x128xf32, #tpu.memory_space<vmem>>, %arg3: memref<16x128xf32, #tpu.memory_space<vmem>>, %arg4: memref<1x3x8x128xf32, #tpu.memory_space<vmem>>) attributes {dimension_semantics = [#tpu.dimension_semantics<arbitrary>, #tpu.dimension_semantics<arbitrary>], iteration_bounds = array<i64: 1, 1>, scalar_prefetch = 0 : i64, scratch_operands = 0 : i64, tpu.core_type = #tpu.core_type<tc>, window_params = [{transform_indices = @transform_0, window_bounds = array<i64: 16, 128>}, {transform_indices = @transform_1, window_bounds = array<i64: 16, 128>}, {transform_indices = @transform_2, window_bounds = array<i64: 1, 3, 8, 128>}]} {
    %c0_i32 = arith.constant 0 : i32
    %0 = arith.cmpi eq, %arg1, %c0_i32 : i32
    %1 = arith.extui %0 : i1 to i32
    %c0_i32_0 = arith.constant 0 : i32
    %2 = arith.cmpi ne, %1, %c0_i32_0 : i32
    scf.if %2 {
      %cst_31 = arith.constant 0.000000e+00 : f32
      %50 = vector.broadcast %cst_31 : f32 to vector<1x3x8x128xf32>
      %c0_32 = arith.constant 0 : index
      %c0_33 = arith.constant 0 : index
      %c0_34 = arith.constant 0 : index
      %c0_35 = arith.constant 0 : index
      %51 = vector.load %arg4[%c0_32, %c0_33, %c0_34, %c0_35] : memref<1x3x8x128xf32, #tpu.memory_space<vmem>>, vector<1x3x8x128xf32>
      tpu.vector_store %arg4[%c0_32, %c0_33, %c0_34, %c0_35], %50 {strides = array<i32>} : memref<1x3x8x128xf32, #tpu.memory_space<vmem>>, vector<1x3x8x128xf32>,
    } else {
    }
    %cst = arith.constant 0.000000e+00 : f32
    %3 = vector.broadcast %cst : f32 to vector<8x128xf32>
    %c0_i32_1 = arith.constant 0 : i32
    %c16_i32 = arith.constant 16 : i32
    %4 = arith.muli %c0_i32_1, %c16_i32 : i32
    %5 = tpu.assume_multiple %4, 8 : i32
    %6 = arith.index_cast %5 : i32 to index
    %c0 = arith.constant 0 : index
    %7 = vector.load %arg2[%6, %c0] : memref<16x128xf32, #tpu.memory_space<vmem>>, vector<16x128xf32>
    %8 = arith.index_cast %5 : i32 to index
    %c0_2 = arith.constant 0 : index
    %9 = vector.load %arg3[%8, %c0_2] : memref<16x128xf32, #tpu.memory_space<vmem>>, vector<16x128xf32>
    %10 = math.log %7 : vector<16x128xf32>
    %cst_3 = arith.constant -1.000000e+02 : f32
    %11 = vector.broadcast %cst_3 : f32 to vector<16x128xf32>
    %12 = arith.maximumf %10, %11 : vector<16x128xf32>
    %cst_4 = arith.constant 1.000000e+00 : f32
    %13 = vector.broadcast %cst_4 : f32 to vector<16x128xf32>
    %14 = arith.subf %13, %7 : vector<16x128xf32>
    %15 = math.log %14 : vector<16x128xf32>
    %cst_5 = arith.constant -1.000000e+02 : f32
    %16 = vector.broadcast %cst_5 : f32 to vector<16x128xf32>
    %17 = arith.maximumf %15, %16 : vector<16x128xf32>
    %18 = arith.subf %12, %17 : vector<16x128xf32>
    %19 = arith.mulf %9, %18 : vector<16x128xf32>
    %20 = arith.addf %17, %19 : vector<16x128xf32>
    %21 = vector.shape_cast %20 : vector<16x128xf32> to vector<2x8x128xf32>
    %cst_6 = arith.constant dense<0.000000e+00> : vector<8x128xf32>
    %22 = vector.multi_reduction <add>, %21, %cst_6 [0] : vector<2x8x128xf32> to vector<8x128xf32>
    %23 = arith.addf %3, %22 : vector<8x128xf32>
    %24 = arith.mulf %7, %9 : vector<16x128xf32>
    %25 = vector.shape_cast %24 : vector<16x128xf32> to vector<2x8x128xf32>
    %cst_7 = arith.constant dense<0.000000e+00> : vector<8x128xf32>
    %26 = vector.multi_reduction <add>, %25, %cst_7 [0] : vector<2x8x128xf32> to vector<8x128xf32>
    %27 = arith.addf %3, %26 : vector<8x128xf32>
    %28 = arith.addf %7, %9 : vector<16x128xf32>
    %29 = vector.shape_cast %28 : vector<16x128xf32> to vector<2x8x128xf32>
    %cst_8 = arith.constant dense<0.000000e+00> : vector<8x128xf32>
    %30 = vector.multi_reduction <add>, %29, %cst_8 [0] : vector<2x8x128xf32> to vector<8x128xf32>
    %31 = arith.addf %3, %30 : vector<8x128xf32>
    %c1_i32 = arith.constant 1 : i32
    %c0_9 = arith.constant 0 : index
    %c0_10 = arith.constant 0 : index
    %c0_11 = arith.constant 0 : index
    %c0_12 = arith.constant 0 : index
    %32 = vector.load %arg4[%c0_9, %c0_10, %c0_11, %c0_12] : memref<1x3x8x128xf32, #tpu.memory_space<vmem>>, vector<1x1x8x128xf32>
    %33 = vector.shape_cast %32 : vector<1x1x8x128xf32> to vector<8x128xf32>
    %34 = arith.addf %33, %23 : vector<8x128xf32>
    %c0_13 = arith.constant 0 : index
    %c0_14 = arith.constant 0 : index
    %c0_15 = arith.constant 0 : index
    %c0_16 = arith.constant 0 : index
    %35 = vector.load %arg4[%c0_13, %c0_14, %c0_15, %c0_16] : memref<1x3x8x128xf32, #tpu.memory_space<vmem>>, vector<1x1x8x128xf32>
    %36 = vector.shape_cast %35 : vector<1x1x8x128xf32> to vector<8x128xf32>
    %37 = vector.shape_cast %34 : vector<8x128xf32> to vector<1x1x8x128xf32>
    tpu.vector_store %arg4[%c0_13, %c0_14, %c0_15, %c0_16], %37 {strides = array<i32>} : memref<1x3x8x128xf32, #tpu.memory_space<vmem>>, vector<1x1x8x128xf32>,
    %c0_17 = arith.constant 0 : index
    %c1 = arith.constant 1 : index
    %c0_18 = arith.constant 0 : index
    %c0_19 = arith.constant 0 : index
    %38 = vector.load %arg4[%c0_17, %c1, %c0_18, %c0_19] : memref<1x3x8x128xf32, #tpu.memory_space<vmem>>, vector<1x1x8x128xf32>
    %39 = vector.shape_cast %38 : vector<1x1x8x128xf32> to vector<8x128xf32>
    %40 = arith.addf %39, %27 : vector<8x128xf32>
    %c0_20 = arith.constant 0 : index
    %c1_21 = arith.constant 1 : index
    %c0_22 = arith.constant 0 : index
    %c0_23 = arith.constant 0 : index
    %41 = vector.load %arg4[%c0_20, %c1_21, %c0_22, %c0_23] : memref<1x3x8x128xf32, #tpu.memory_space<vmem>>, vector<1x1x8x128xf32>
    %42 = vector.shape_cast %41 : vector<1x1x8x128xf32> to vector<8x128xf32>
    %43 = vector.shape_cast %40 : vector<8x128xf32> to vector<1x1x8x128xf32>
    tpu.vector_store %arg4[%c0_20, %c1_21, %c0_22, %c0_23], %43 {strides = array<i32>} : memref<1x3x8x128xf32, #tpu.memory_space<vmem>>, vector<1x1x8x128xf32>,
    %c0_24 = arith.constant 0 : index
    %c2 = arith.constant 2 : index
    %c0_25 = arith.constant 0 : index
    %c0_26 = arith.constant 0 : index
    %44 = vector.load %arg4[%c0_24, %c2, %c0_25, %c0_26] : memref<1x3x8x128xf32, #tpu.memory_space<vmem>>, vector<1x1x8x128xf32>
    %45 = vector.shape_cast %44 : vector<1x1x8x128xf32> to vector<8x128xf32>
    %46 = arith.addf %45, %31 : vector<8x128xf32>
    %c0_27 = arith.constant 0 : index
    %c2_28 = arith.constant 2 : index
    %c0_29 = arith.constant 0 : index
    %c0_30 = arith.constant 0 : index
    %47 = vector.load %arg4[%c0_27, %c2_28, %c0_29, %c0_30] : memref<1x3x8x128xf32, #tpu.memory_space<vmem>>, vector<1x1x8x128xf32>
    %48 = vector.shape_cast %47 : vector<1x1x8x128xf32> to vector<8x128xf32>
    %49 = vector.shape_cast %46 : vector<8x128xf32> to vector<1x1x8x128xf32>
    tpu.vector_store %arg4[%c0_27, %c2_28, %c0_29, %c0_30], %49 {strides = array<i32>} : memref<1x3x8x128xf32, #tpu.memory_space<vmem>>, vector<1x1x8x128xf32>,
    return
  }
  func.func @transform_0(%arg0: i32, %arg1: i32) -> (i32, i32) {
    %c1_i32 = arith.constant 1 : i32
    %0 = arith.muli %arg0, %c1_i32 : i32
    %1 = arith.addi %0, %arg1 : i32
    %c0_i32 = arith.constant 0 : i32
    %2 = arith.minsi %1, %c0_i32 : i32
    %c0_i32_0 = arith.constant 0 : i32
    %c0_i32_1 = arith.constant 0 : i32
    return %2, %c0_i32_0 : i32, i32
  }
  func.func @transform_1(%arg0: i32, %arg1: i32) -> (i32, i32) {
    %c1_i32 = arith.constant 1 : i32
    %0 = arith.muli %arg0, %c1_i32 : i32
    %1 = arith.addi %0, %arg1 : i32
    %c0_i32 = arith.constant 0 : i32
    %2 = arith.minsi %1, %c0_i32 : i32
    %c0_i32_0 = arith.constant 0 : i32
    %c0_i32_1 = arith.constant 0 : i32
    return %2, %c0_i32_0 : i32, i32
  }
  func.func @transform_2(%arg0: i32, %arg1: i32) -> (i32, i32, i32, i32) {
    %c0_i32 = arith.constant 0 : i32
    %c0_i32_0 = arith.constant 0 : i32
    %c0_i32_1 = arith.constant 0 : i32
    %c0_i32_2 = arith.constant 0 : i32
    return %arg0, %c0_i32, %c0_i32_0, %c0_i32_1 : i32, i32, i32, i32
  }
}

</mosaic_0001>

<llo_original>
// kernel: tpu_custom_call.1
$region0: #{tpu_custom_call.1}
  #allocation0 [shape = 'u32[]', space=smem, size = 0x4, offset = 0x4, fixed_abs, tag = 'smem constant byte address 0x4 - core index']
  #allocation1 [shape = 'u32[144,128]{1,0:T(1,128)}', space=vmem, size = 0x12000, scoped, tag = 'internal scratch']
  %s0 = inlined_call_operand.hbm [shape: f32[16,128], index: 0, kind: input, shape index: {}]
  %s1 = inlined_call_operand.hbm [shape: f32[16,128], index: 1, kind: input, shape index: {}]
  %s2 = inlined_call_operand.hbm [shape: f32[1,3,8,128], index: 2, kind: output, shape index: {}]
  %s3 = sld [smem:[#allocation0]]
  $region30: #{tpu_custom_call.1} parent=0
    _
  %s5 = ssub.s32 1, %s3
  %s6 = scalar_select 0, %s5, %s3
  $region1: #{tpu_custom_call.1} parent=0
    #allocation2 [shape = 'u8[8192]{0}', space=vmem, size = 0x2000, scoped, tag = 'input window, operand 0, single buffered']
    #allocation3 [shape = 's32[1]{0}', space=sflag, size = 0x4, scoped, tag = 'scoped memory for tpu_custom_call.1']
    #allocation4 [shape = 's32[1]{0}', space=sflag, size = 0x4, scoped, tag = 'scoped memory for tpu_custom_call.1']
    #allocation5 [shape = 'u8[8192]{0}', space=vmem, size = 0x2000, scoped, tag = 'input window, operand 1, single buffered']
    #allocation6 [shape = 's32[1]{0}', space=sflag, size = 0x4, scoped, tag = 'scoped memory for tpu_custom_call.1']
    #allocation7 [shape = 'u8[12288]{0}', space=vmem, size = 0x3000, scoped, tag = 'output window, operand 0, single buffered']
    %7 = vsyncpa [#allocation3], 0
    %8 = vsyncpa [#allocation6], 0
    %9 = vsyncpa [#allocation4], 0
    // Predicated region
    $region2: #{tpu_custom_call.1} parent=1 // pred_check
      _
    $region3: #{tpu_custom_call.1} parent=1 // pred_check_branch
      %11 = sbr.rel (0) target = $region5
    $region4: #{tpu_custom_call.1} parent=1 // pred_region
      %s12 = sadd.s32 0, 0
      %p13 = scmp.lt.s32.totalorder %s12, 0
      %s14 = scalar_select %p13, %s12, 0
      %s15 = smul.u32 2, %s14
      %s17 = ssub.s32 256, 256
      %18 = vsyncadd [#allocation3], %s17
      %s19 = smul.addr %s15, 128
      %s20 = scalar_lea.hbm %s0, %s19
      %s21 = sshll.u32 [#allocation2], 4
      %s22 = int_to_ptr.vmem [resolvable:$true] %s21
      %27 = dma.hbm_to_vmem [thread:$0]  %s20, 256, %s22, [#allocation3], 128, 128, 8
    $region5: #{tpu_custom_call.1} parent=1 // pred_fallthru
      _
    // Predicated region
    $region6: #{tpu_custom_call.1} parent=1 // pred_check
      _
    $region7: #{tpu_custom_call.1} parent=1 // pred_check_branch
      %29 = sbr.rel (0) target = $region9
    $region8: #{tpu_custom_call.1} parent=1 // pred_region
      %s30 = sadd.s32 0, 0
      %p31 = scmp.lt.s32.totalorder %s30, 0
      %s32 = scalar_select %p31, %s30, 0
      %s33 = smul.u32 2, %s32
      %s35 = ssub.s32 256, 256
      %36 = vsyncadd [#allocation6], %s35
      %s37 = smul.addr %s33, 128
      %s38 = scalar_lea.hbm %s1, %s37
      %s39 = sshll.u32 [#allocation5], 4
      %s40 = int_to_ptr.vmem [resolvable:$true] %s39
      %45 = dma.hbm_to_vmem [thread:$0]  %s38, 256, %s40, [#allocation6], 128, 128, 8
    $region9: #{tpu_custom_call.1} parent=1 // pred_fallthru
      _
    // Predicated region
    $region10: #{tpu_custom_call.1} parent=1 // pred_check
      _
    $region11: #{tpu_custom_call.1} parent=1 // pred_check_branch
      %47 = sbr.rel (0) target = $region13
    $region12: #{tpu_custom_call.1} parent=1 // pred_region
      %48 = dma.done [#allocation3], 256
    $region13: #{tpu_custom_call.1} parent=1 // pred_fallthru
      _
    // Predicated region
    $region14: #{tpu_custom_call.1} parent=1 // pred_check
      _
    $region15: #{tpu_custom_call.1} parent=1 // pred_check_branch
      %50 = sbr.rel (0) target = $region17
    $region16: #{tpu_custom_call.1} parent=1 // pred_region
      %51 = dma.done [#allocation6], 256
    $region17: #{tpu_custom_call.1} parent=1 // pred_fallthru
      _
    %s52 = sadd.s32 0, 0
    %p53 = scmp.lt.s32.totalorder %s52, 0
    %s54 = scalar_select %p53, %s52, 0
    %s55 = smul.u32 2, %s54
    %s56 = sadd.s32 0, 0
    %p57 = scmp.lt.s32.totalorder %s56, 0
    %s58 = scalar_select %p57, %s56, 0
    %s59 = smul.u32 2, %s58
    %p60 = scmp.eq.s32.totalorder 0, 0
    // Predicated region
    $region18: #{tpu_custom_call.1} parent=1 // pred_check
      %p61 = pneg %p60
    $region19: #{tpu_custom_call.1} parent=1 // pred_check_branch
      %63 = sbr.rel (%p61) target = $region21
    $region20: #{tpu_custom_call.1} parent=1 // pred_region
      %64 = vst [vmem:[#allocation7] sm:$0xff] 0.0
      %65 = vst [vmem:[#allocation7 + $0x8] sm:$0xff] 0.0
      %66 = vst [vmem:[#allocation7 + $0x10] sm:$0xff] 0.0
    $region21: #{tpu_custom_call.1} parent=1 // pred_fallthru
      _
    %v67 = vld [vmem:[#allocation2] sm:$0xff]
    %v68 = vld [vmem:[#allocation2 + $0x8] sm:$0xff]
    %v69 = vld [vmem:[#allocation5] sm:$0xff]
    %v70 = vld [vmem:[#allocation5 + $0x8] sm:$0xff]
    %v71 = vlog2.pop %v67
    %v72 = vmul.f32 %v71, 0.6931472
    %v73 = vlog2.pop %v68
    %v74 = vmul.f32 %v73, 0.6931472
    %v75 = vmax.f32 %v72, -100.0
    %v76 = vmax.f32 %v74, -100.0
    %v77 = vsub.f32 1.0, %v67
    %v78 = vsub.f32 1.0, %v68
    %v79 = vlog2.pop %v77
    %v80 = vmul.f32 %v79, 0.6931472
    %v81 = vlog2.pop %v78
    %v82 = vmul.f32 %v81, 0.6931472
    %v83 = vmax.f32 %v80, -100.0
    %v84 = vmax.f32 %v82, -100.0
    %v85 = vsub.f32 %v75, %v83
    %v86 = vsub.f32 %v76, %v84
    %v87 = vmul.f32 %v69, %v85
    %v88 = vmul.f32 %v70, %v86
    %v89 = vadd.f32 %v83, %v87
    %v90 = vadd.f32 %v84, %v88
    %v91 = vadd.f32 %v89, %v90
    %v92 = vadd.f32 %v91, 0.0
    %v93 = vmul.f32 %v67, %v69
    %v94 = vmul.f32 %v68, %v70
    %v95 = vadd.f32 %v93, %v94
    %v96 = vadd.f32 %v95, 0.0
    %v97 = vadd.f32 %v67, %v69
    %v98 = vadd.f32 %v68, %v70
    %v99 = vadd.f32 %v97, %v98
    %v100 = vadd.f32 %v99, 0.0
    %v101 = vld [vmem:[#allocation7] sm:$0xff]
    %v102 = vadd.f32 %v101, %v92
    %103 = vst [vmem:[#allocation7] sm:$0xff] %v102
    %s104 = scalar_lea.vmem [#allocation7], 8
    %v105 = vld [vmem:[%s104] sm:$0xff]
    %v106 = vadd.f32 %v105, %v96
    %107 = vst [vmem:[%s104] sm:$0xff] %v106
    %s108 = scalar_lea.vmem [#allocation7], 16
    %v109 = vld [vmem:[%s108] sm:$0xff]
    %v110 = vadd.f32 %v109, %v100
    %111 = vst [vmem:[%s108] sm:$0xff] %v110
    // Predicated region
    $region22: #{tpu_custom_call.1} parent=1 // pred_check
      _
    $region23: #{tpu_custom_call.1} parent=1 // pred_check_branch
      %113 = sbr.rel (0) target = $region25
    $region24: #{tpu_custom_call.1} parent=1 // pred_region
      %s115 = ssub.s32 384, 384
      %116 = vsyncadd [#allocation4], %s115
      %s117 = sshll.u32 [#allocation7], 4
      %s118 = int_to_ptr.vmem [resolvable:$true] %s117
      %123 = dma.vmem_to_hbm [thread:$0]  %s118, 384, %s2, [#allocation4], 128, 128, 8
    $region25: #{tpu_custom_call.1} parent=1 // pred_fallthru
      _
    // Predicated region
    $region26: #{tpu_custom_call.1} parent=1 // pred_check
      _
    $region27: #{tpu_custom_call.1} parent=1 // pred_check_branch
      %125 = sbr.rel (0) target = $region29
    $region28: #{tpu_custom_call.1} parent=1 // pred_region
      %126 = dma.done [#allocation4], 384
    $region29: #{tpu_custom_call.1} parent=1 // pred_fallthru
      _
    %127 = vsyncpa [#allocation3], 1
    %128 = vsyncpa [#allocation6], 1
    %129 = vsyncpa [#allocation4], 1

</llo_original>
